<compile_context>
chip_gen: v7x
topology: tpu7x:2x2x1
jax: 0.10.0
libtpu: 0.0.40
codegen_flags: <defaults>
</compile_context>

<pallas_src>
import math

import jax
import jax.numpy as jnp
from jax import lax
from jax.experimental import pallas as pl
from jax.experimental.pallas import tpu as pltpu


def _round_up(x, m):
    return ((x + m - 1) // m) * m


def _vmem_capacity_bytes():
    # Generation-aware VMEM ceiling (64 MiB per TC on v7x, 128 MiB on v5e/v6e).
    try:
        return int(pltpu.get_tpu_info().vmem_capacity_bytes)
    except Exception:
        return 64 * 1024 * 1024  # safe lower bound across generations


# ---------------------------------------------------------------------------
# Kernels
# ---------------------------------------------------------------------------
def _linear_resident_kernel(x_ref, w_ref, b_ref, o_ref):
    """Fast path: whole (K, Npad) weight + f32 bias resident in VMEM.

    No K grid axis, no accumulator scratch; bias stays f32 until the final
    cast into the output dtype.
    """
    acc = jnp.dot(x_ref[...], w_ref[...], preferred_element_type=jnp.float32)
    o_ref[...] = (acc + b_ref[...]).astype(o_ref.dtype)


def _make_grid_kernel(in_channels, tk, needs_k_mask, single_k_step):
    """(M, N, K)-grid kernel, NN form (weight presented as (K, N) tiles)."""

    def _masked_x(x_ref, k):
        x = x_ref[...]
        if needs_k_mask:
            # x is NOT padded in HBM; the last K block extends past
            # in_channels.  Zero the out-of-range columns so garbage
            # (possibly NaN) from the partial edge block never reaches the
            # MXU accumulation.
            col = lax.broadcasted_iota(jnp.int32, x.shape, 1) + k * tk
            x = jnp.where(col < in_channels, x, jnp.zeros_like(x))
        return x

    if single_k_step:
        # K fits in one tile: skip the f32 accumulator entirely.
        def kernel(x_ref, w_ref, b_ref, o_ref):
            x = _masked_x(x_ref, 0)
            acc = jnp.dot(x, w_ref[...], preferred_element_type=jnp.float32)
            o_ref[...] = (acc + b_ref[...]).astype(o_ref.dtype)
        return kernel

    def kernel(x_ref, w_ref, b_ref, o_ref, acc_ref):
        k = pl.program_id(2)

        @pl.when(k == 0)
        def _():
            acc_ref[...] = jnp.zeros_like(acc_ref)

        x = _masked_x(x_ref, k)
        acc_ref[...] += jnp.dot(x, w_ref[...],
                                preferred_element_type=jnp.float32)

        @pl.when(k == pl.num_programs(2) - 1)
        def _():
            o_ref[...] = (acc_ref[...] + b_ref[...]).astype(o_ref.dtype)

    return kernel


# ---------------------------------------------------------------------------
# Wrapper
# ---------------------------------------------------------------------------
def pallas_linear(x, weight, bias=None, *, tm=None, tn=None, tk=None,
                  max_resident_weight_bytes=None):
    """y = x @ weight.T + bias, computed in a Pallas TPU kernel.

    x:      (..., in_channels)
    weight: (out_channels, in_channels)
    bias:   (out_channels,) or None

    Tile overrides (tm/tn/tk), if given, should be multiples of the sublane /
    128-lane granularity.  `max_resident_weight_bytes` overrides the fast-path
    threshold (set to 0 to force the (M, N, K)-grid path).
    """
    orig_shape = x.shape
    in_channels = orig_shape[-1]
    out_channels, wk = weight.shape
    assert wk == in_channels

    x2 = x.reshape(-1, in_channels)
    m = x2.shape[0]
    out_dtype = x.dtype

    x_isz = jnp.dtype(x.dtype).itemsize
    w_isz = jnp.dtype(weight.dtype).itemsize
    o_isz = jnp.dtype(out_dtype).itemsize
    sub = max(8, 32 // x_isz)          # dtype-aware sublane multiple (8/16/32)

    # Generation-aware VMEM budget.
    vmem_cap = _vmem_capacity_bytes()
    vmem_ceiling = int(vmem_cap * 0.85)   # headroom under physical capacity
    budget = int(vmem_ceiling * 0.75)     # planning budget for our tiles

    n_pad128 = _round_up(out_channels, 128)   # lane-dense output width
    flops = 2 * m * in_channels * out_channels

    def _bias_row(n_padded):
        # Bias stays f32 (tiny) so no precision is lost before the f32
        # accumulate; only the final result is cast to the output dtype.
        if bias is None:
            return jnp.zeros((1, n_padded), jnp.float32)
        b = bias.astype(jnp.float32).reshape(1, out_channels)
        if n_padded != out_channels:
            b = jnp.pad(b, ((0, 0), (0, n_padded - out_channels)))
        return b

    # NN-form weight: present W as (K, N) so the kernel contraction is plain
    # A@B on the MXU with no per-step XLU tile transpose.  One-time HBM pass
    # over the (small / static) weight; amortized across calls.
    w_kn = jnp.swapaxes(weight, 0, 1)          # (K, N)

    # ------------------ fast path: weight resident in VMEM -----------------
    # (2x: BlockSpec allocates double buffers even for a constant block index)
    w_resident_bytes = 2 * in_channels * n_pad128 * w_isz + 2 * n_pad128 * 4
    resident_cap = (budget // 2 if max_resident_weight_bytes is None
                    else max_resident_weight_bytes)

    if w_resident_bytes <= resident_cap:
        w_pad = w_kn
        if n_pad128 != out_channels:
            w_pad = jnp.pad(w_kn, ((0, 0), (0, n_pad128 - out_channels)))
        b_row = _bias_row(n_pad128)

        # Size the M tile against the remaining VMEM budget, then shrink it
        # adaptively to minimize M-tail waste for awkward m.
        per_row = 2 * in_channels * x_isz + 2 * n_pad128 * o_isz
        tm_cap = max(sub, ((budget - w_resident_bytes) // per_row) // sub * sub)
        tm_eff = tm if tm is not None else 512
        tm_eff = min(tm_eff, tm_cap, _round_up(m, sub))
        n_m_tiles = pl.cdiv(m, tm_eff)
        tm_eff = min(tm_eff, _round_up(pl.cdiv(m, n_m_tiles), sub))

        cost = pl.CostEstimate(
            flops=flops, transcendentals=0,
            bytes_accessed=(x2.size * x_isz + w_pad.size * w_isz
                            + b_row.size * 4 + m * n_pad128 * o_isz))

        out = pl.pallas_call(
            _linear_resident_kernel,
            out_shape=jax.ShapeDtypeStruct((m, n_pad128), out_dtype),
            grid_spec=pltpu.PrefetchScalarGridSpec(
                num_scalar_prefetch=0,
                grid=(pl.cdiv(m, tm_eff),),
                in_specs=[
                    # x: K taken as the full (possibly sub-128) last dim -> no
                    # K padding needed; M tail handled by edge-block masking.
                    pl.BlockSpec((tm_eff, in_channels), lambda i: (i, 0)),
                    # Constant block index: fetched once, stays resident.
                    # TODO(synk): pipeline_mode=pl.Buffered(1) would return the
                    # unused second weight buffer to the tile budget.
                    pl.BlockSpec((in_channels, n_pad128), lambda i: (0, 0)),
                    pl.BlockSpec((1, n_pad128), lambda i: (0, 0)),
                ],
                out_specs=pl.BlockSpec((tm_eff, n_pad128), lambda i: (i, 0)),
            ),
            compiler_params=pltpu.CompilerParams(
                dimension_semantics=("parallel",),
                vmem_limit_bytes=vmem_ceiling,
            ),
            cost_estimate=cost,
        )(x2, w_pad, b_row)

        if n_pad128 != out_channels:
            out = out[:, :out_channels]
        return out.reshape(*orig_shape[:-1], out_channels)

    # ------------- general path: (M, N, K) grid + f32 accumulator ----------
    k_al = _round_up(in_channels, 128)
    # Prefer 256-aligned N/K tiles for the v6e/v7x 256x256 MXUs; fall back to
    # the full (128-aligned) extent only when the problem is genuinely small.
    tk_eff = tk if tk is not None else (k_al if k_al <= 1024 else 1024)
    tn_eff = tn if tn is not None else (n_pad128 if n_pad128 <= 512 else 512)
    tm_eff = tm if tm is not None else 512
    tm_eff = min(tm_eff, _round_up(m, sub))
    n_m_tiles = pl.cdiv(m, tm_eff)
    tm_eff = min(tm_eff, _round_up(pl.cdiv(m, n_m_tiles), sub))

    def _footprint(tm_, tn_, tk_):
        return (2 * tm_ * tk_ * x_isz + 2 * tk_ * tn_ * w_isz
                + 2 * tn_ * 4 + 2 * tm_ * tn_ * o_isz + tm_ * tn_ * 4)

    while _footprint(tm_eff, tn_eff, tk_eff) > budget and tk_eff > 256:
        tk_eff = max(128, _round_up(tk_eff // 2, 128))
    while _footprint(tm_eff, tn_eff, tk_eff) > budget and tn_eff > 256:
        tn_eff = max(128, _round_up(tn_eff // 2, 128))
    while _footprint(tm_eff, tn_eff, tk_eff) > budget and tm_eff > sub:
        tm_eff = max(sub, _round_up(tm_eff // 2, sub))

    nm = pl.cdiv(m, tm_eff)
    nn = pl.cdiv(out_channels, tn_eff)
    nk = pl.cdiv(in_channels, tk_eff)
    k_pad = nk * tk_eff
    n_pad = nn * tn_eff

    # Pad only the weight / bias (one-time, amortized); x is never padded:
    # its K tail is masked in-kernel, its M tail relies on dropped
    # out-of-bounds output writes at the edge block.
    w_pad = w_kn
    if k_pad != in_channels or n_pad != out_channels:
        w_pad = jnp.pad(
            w_kn, ((0, k_pad - in_channels), (0, n_pad - out_channels)))
    b_row = _bias_row(n_pad)

    needs_k_mask = (in_channels % tk_eff) != 0
    single_k = (nk == 1)
    kernel = _make_grid_kernel(in_channels, tk_eff, needs_k_mask, single_k)
    scratch = [] if single_k else [pltpu.VMEM((tm_eff, tn_eff), jnp.float32)]

    cost = pl.CostEstimate(
        flops=flops, transcendentals=0,
        bytes_accessed=(x2.size * x_isz * nn + w_pad.size * w_isz * nm
                        + b_row.size * 4 + m * n_pad * o_isz))

    # TODO(synk): on v7x, verify in xprof that the parallel M/N axes shard
    # across both TensorCores; add an explicit core split if only one is busy.
    out = pl.pallas_call(
        kernel,
        out_shape=jax.ShapeDtypeStruct((m, n_pad), out_dtype),
        grid_spec=pltpu.PrefetchScalarGridSpec(
            num_scalar_prefetch=0,
            grid=(nm, nn, nk),
            in_specs=[
                pl.BlockSpec((tm_eff, tk_eff), lambda i, j, k: (i, k)),
                pl.BlockSpec((tk_eff, tn_eff), lambda i, j, k: (k, j)),
                pl.BlockSpec((1, tn_eff), lambda i, j, k: (0, j)),
            ],
            out_specs=pl.BlockSpec((tm_eff, tn_eff), lambda i, j, k: (i, j)),
            scratch_shapes=scratch,
        ),
        compiler_params=pltpu.CompilerParams(
            dimension_semantics=("parallel", "parallel", "arbitrary"),
            vmem_limit_bytes=vmem_ceiling,
        ),
        cost_estimate=cost,
    )(x2, w_pad, b_row)

    if n_pad != out_channels:
        out = out[:, :out_channels]
    return out.reshape(*orig_shape[:-1], out_channels)


def init_linear_params(key, in_channels, out_channels, bias=True,
                       dtype=jnp.float32):
    """Matches the module's default init:
    weight: kaiming_uniform(fan=in, a=sqrt(5)) -> U(-1/sqrt(in), 1/sqrt(in))
    bias:   inits.uniform(in, bias)            -> U(-1/sqrt(in), 1/sqrt(in))
    """
    kw, kb = jax.random.split(key)
    bound = 1.0 / math.sqrt(in_channels)
    weight = jax.random.uniform(
        kw, (out_channels, in_channels), dtype=dtype, minval=-bound, maxval=bound)
    b = None
    if bias:
        b = jax.random.uniform(
            kb, (out_channels,), dtype=dtype, minval=-bound, maxval=bound)
    return weight, b


if __name__ == "__main__":
    key = jax.random.PRNGKey(0)
    k_x, k_p, k_x3, k_p2, k_x4 = jax.random.split(key, 5)

    # Small GNN-style Linear: 10 nodes, 32 -> 64 (weight-resident fast path).
    num_nodes, in_channels, out_channels = 10, 32, 64
    x = jax.random.normal(k_x, (num_nodes, in_channels), dtype=jnp.float32)
    weight, bias = init_linear_params(k_p, in_channels, out_channels, bias=True)

    y = jax.block_until_ready(pallas_linear(x, weight, bias))
    y_ref = x @ weight.T + bias
    assert y.shape == (num_nodes, out_channels)
    assert jnp.allclose(y, y_ref, atol=1e-4, rtol=1e-4)

    # Arbitrary leading dims + no bias (F.linear semantics).
    x3 = jax.random.normal(k_x3, (2, 7, in_channels), dtype=jnp.float32)
    y3 = jax.block_until_ready(pallas_linear(x3, weight, None))
    assert y3.shape == (2, 7, out_channels)
    assert jnp.allclose(y3, x3 @ weight.T, atol=1e-4, rtol=1e-4)

    # Force the general (M, N, K)-grid path with a K tail at small shapes
    # (exercises the f32 accumulator and the in-kernel K mask).
    in2, out2 = 200, 96
    x4 = jax.random.normal(k_x4, (13, in2), dtype=jnp.float32)
    w2, b2 = init_linear_params(k_p2, in2, out2, bias=True)
    y4 = jax.block_until_ready(
        pallas_linear(x4, w2, b2, tk=128, max_resident_weight_bytes=0))
    assert y4.shape == (13, out2)
    assert jnp.allclose(y4, x4 @ w2.T + b2, atol=1e-4, rtol=1e-4)

    print("KERNEL_OK")
</pallas_src>

<mosaic_0001>
module attributes {stable_mosaic.version = 11 : i64} {
  func.func @_linear_resident_kernel(%arg0: i32, %arg1: memref<16x32xf32, #tpu.memory_space<vmem>>, %arg2: memref<32x128xf32, #tpu.memory_space<vmem>>, %arg3: memref<1x128xf32, #tpu.memory_space<vmem>>, %arg4: memref<16x128xf32, #tpu.memory_space<vmem>>) attributes {dimension_semantics = [#tpu.dimension_semantics<parallel>], iteration_bounds = array<i64: 1>, scalar_prefetch = 0 : i64, scratch_operands = 0 : i64, tpu.core_type = #tpu.core_type<tc>, window_params = [{transform_indices = @transform_0, window_bounds = array<i64: 16, 32>}, {pipeline_mode = #tpu.pipeline_mode<synchronous>, transform_indices = @transform_1, window_bounds = array<i64: 32, 128>}, {pipeline_mode = #tpu.pipeline_mode<synchronous>, transform_indices = @transform_2, window_bounds = array<i64: 1, 128>}, {transform_indices = @transform_3, window_bounds = array<i64: 16, 128>}]} {
    %c0 = arith.constant 0 : index
    %c0_0 = arith.constant 0 : index
    %0 = vector.load %arg1[%c0, %c0_0] : memref<16x32xf32, #tpu.memory_space<vmem>>, vector<16x32xf32>
    %c0_1 = arith.constant 0 : index
    %c0_2 = arith.constant 0 : index
    %1 = vector.load %arg2[%c0_1, %c0_2] : memref<32x128xf32, #tpu.memory_space<vmem>>, vector<32x128xf32>
    %cst = arith.constant dense<0.000000e+00> : vector<16x128xf32>
    %2 = tpu.matmul %0, %1, %cst {dimension_numbers = #tpu.dot_dimension_numbers<[1], [0], [0], [1], [0, 0, 1, 1], [], []>} : vector<16x32xf32>, vector<32x128xf32>, vector<16x128xf32> -> vector<16x128xf32>
    %c0_3 = arith.constant 0 : index
    %c0_4 = arith.constant 0 : index
    %3 = vector.load %arg3[%c0_3, %c0_4] : memref<1x128xf32, #tpu.memory_space<vmem>>, vector<1x128xf32>
    %4 = vector.broadcast %3 : vector<1x128xf32> to vector<16x128xf32>
    %5 = arith.addf %2, %4 : vector<16x128xf32>
    %c0_5 = arith.constant 0 : index
    %c0_6 = arith.constant 0 : index
    %6 = vector.load %arg4[%c0_5, %c0_6] : memref<16x128xf32, #tpu.memory_space<vmem>>, vector<16x128xf32>
    tpu.vector_store %arg4[%c0_5, %c0_6], %5 {strides = array<i32>} : memref<16x128xf32, #tpu.memory_space<vmem>>, vector<16x128xf32>,
    return
  }
  func.func @transform_0(%arg0: i32) -> (i32, i32) {
    %c0_i32 = arith.constant 0 : i32
    %c0_i32_0 = arith.constant 0 : i32
    return %arg0, %c0_i32 : i32, i32
  }
  func.func @transform_1(%arg0: i32) -> (i32, i32) {
    %c0_i32 = arith.constant 0 : i32
    %c0_i32_0 = arith.constant 0 : i32
    %c0_i32_1 = arith.constant 0 : i32
    return %c0_i32, %c0_i32_0 : i32, i32
  }
  func.func @transform_2(%arg0: i32) -> (i32, i32) {
    %c0_i32 = arith.constant 0 : i32
    %c0_i32_0 = arith.constant 0 : i32
    %c0_i32_1 = arith.constant 0 : i32
    return %c0_i32, %c0_i32_0 : i32, i32
  }
  func.func @transform_3(%arg0: i32) -> (i32, i32) {
    %c0_i32 = arith.constant 0 : i32
    %c0_i32_0 = arith.constant 0 : i32
    return %arg0, %c0_i32 : i32, i32
  }
}

</mosaic_0001>

<llo_original>
// kernel: tpu_custom_call.1
$region0: #{tpu_custom_call.1}
  #allocation0 [shape = 'u32[]', space=smem, size = 0x4, offset = 0x4, fixed_abs, tag = 'smem constant byte address 0x4 - core index']
  #allocation1 [shape = 'u32[144,128]{1,0:T(1,128)}', space=vmem, size = 0x12000, scoped, tag = 'internal scratch']
  %s0 = inlined_call_operand.hbm [shape: f32[10,32], index: 0, kind: input, shape index: {}]
  %s1 = inlined_call_operand.hbm [shape: f32[32,128], index: 1, kind: input, shape index: {}]
  %s2 = inlined_call_operand.vmem [shape: f32[1,128], index: 2, kind: input, shape index: {}]
  %s3 = inlined_call_operand.hbm [shape: f32[10,128], index: 3, kind: output, shape index: {}]
  %s4 = sld [smem:[#allocation0]]
  $region30: #{tpu_custom_call.1} parent=0
    _
  %s6 = ssub.s32 1, %s4
  %s7 = scalar_select 0, %s6, %s4
  $region1: #{tpu_custom_call.1} parent=0
    #allocation2 [shape = 'u8[8192]{0}', space=vmem, size = 0x2000, scoped, tag = 'input window, operand 0, single buffered']
    #allocation3 [shape = 's32[1]{0}', space=sflag, size = 0x4, scoped, tag = 'scoped memory for tpu_custom_call.1']
    #allocation4 [shape = 's32[1]{0}', space=sflag, size = 0x4, scoped, tag = 'scoped memory for tpu_custom_call.1']
    #allocation5 [shape = 'u8[16384]{0}', space=vmem, size = 0x4000, scoped, tag = 'input window, operand 1, single buffered']
    #allocation6 [shape = 's32[1]{0}', space=sflag, size = 0x4, scoped, tag = 'scoped memory for tpu_custom_call.1']
    #allocation7 [shape = 'u8[8192]{0}', space=vmem, size = 0x2000, scoped, tag = 'output window, operand 0, single buffered']
    %8 = vsyncpa [#allocation3], 0
    %9 = vsyncpa [#allocation6], 0
    %10 = vsyncpa [#allocation4], 0
    // Predicated region
    $region2: #{tpu_custom_call.1} parent=1 // pred_check
      _
    $region3: #{tpu_custom_call.1} parent=1 // pred_check_branch
      %12 = sbr.rel (0) target = $region5
    $region4: #{tpu_custom_call.1} parent=1 // pred_region
      %s14 = ssub.s32 256, 256
      %15 = vsyncadd [#allocation3], %s14
      %s16 = sshll.u32 [#allocation2], 4
      %s17 = int_to_ptr.vmem [resolvable:$true] %s16
      %22 = dma.hbm_to_vmem [thread:$0]  %s0, 256, %s17, [#allocation3], 128, 128, 8
    $region5: #{tpu_custom_call.1} parent=1 // pred_fallthru
      _
    // Predicated region
    $region6: #{tpu_custom_call.1} parent=1 // pred_check
      _
    $region7: #{tpu_custom_call.1} parent=1 // pred_check_branch
      %24 = sbr.rel (0) target = $region9
    $region8: #{tpu_custom_call.1} parent=1 // pred_region
      %s26 = ssub.s32 512, 512
      %27 = vsyncadd [#allocation6], %s26
      %s28 = sshll.u32 [#allocation5], 4
      %s29 = int_to_ptr.vmem [resolvable:$true] %s28
      %34 = dma.hbm_to_vmem [thread:$0]  %s1, 512, %s29, [#allocation6], 128, 128, 8
    $region9: #{tpu_custom_call.1} parent=1 // pred_fallthru
      _
    // Predicated region
    $region10: #{tpu_custom_call.1} parent=1 // pred_check
      _
    $region11: #{tpu_custom_call.1} parent=1 // pred_check_branch
      %36 = sbr.rel (0) target = $region13
    $region12: #{tpu_custom_call.1} parent=1 // pred_region
      _
    $region13: #{tpu_custom_call.1} parent=1 // pred_fallthru
      _
    // Predicated region
    $region14: #{tpu_custom_call.1} parent=1 // pred_check
      _
    $region15: #{tpu_custom_call.1} parent=1 // pred_check_branch
      %38 = sbr.rel (0) target = $region17
    $region16: #{tpu_custom_call.1} parent=1 // pred_region
      %39 = dma.done [#allocation3], 256
    $region17: #{tpu_custom_call.1} parent=1 // pred_fallthru
      _
    // Predicated region
    $region18: #{tpu_custom_call.1} parent=1 // pred_check
      _
    $region19: #{tpu_custom_call.1} parent=1 // pred_check_branch
      %41 = sbr.rel (0) target = $region21
    $region20: #{tpu_custom_call.1} parent=1 // pred_region
      %42 = dma.done [#allocation6], 512
    $region21: #{tpu_custom_call.1} parent=1 // pred_fallthru
      _
    %v43 = vld [vmem:[#allocation2] sm:$0xff]
    %v44 = vld [vmem:[#allocation2 + $0x8] sm:$0xff]
    %v45 = vld [vmem:[#allocation5] sm:$0xff]
    %v46 = vld [vmem:[#allocation5 + $0x8] sm:$0xff]
    %v47 = vld [vmem:[#allocation5 + $0x10] sm:$0xff]
    %v48 = vld [vmem:[#allocation5 + $0x18] sm:$0xff]
    %v49 = vld [vmem:[%s2] sm:$0x1]
    %v51 = vlaneseq
    %v52 = vshrl.u32 %v51, 7
    %v53 = vsub.s32 0, %v52
    %v54 = vrot.slane %v49, %v53
    %vm56 = vcmask 261120
    %v58 = vsel %vm56, %v43, 0
    %v61 = vsel %vm56, %v44, 0
    %63 = vmatprep.subr.mxu0 0.0
    %64 = vmatpush1.msra.mxu0 %v45
    %65 = vmatprep.subr.mxu0 0.0
    %66 = vmatpush1.msra.mxu0 %v46
    %67 = vmatprep.subr.mxu0 0.0
    %68 = vmatpush1.msra.mxu0 %v47
    %69 = vmatprep.subr.mxu0 0.0
    %70 = vmatpush1.msra.mxu0 %v48
    %71 = vmatprep.subr.mxu0 0.0
    %72 = vmatpush1.msra.mxu0 0.0
    %73 = vmatprep.subr.mxu0 0.0
    %74 = vmatpush1.msra.mxu0 0.0
    %75 = vmatprep.subr.mxu0 0.0
    %76 = vmatpush1.msra.mxu0 0.0
    %77 = vmatprep.subr.mxu0 0.0
    %78 = vmatpush1.msra.mxu0 0.0
    %79 = vmatprep.subr.mxu0 0.0
    %80 = vmatpush1.msra.mxu0 0.0
    %81 = vmatprep.subr.mxu0 0.0
    %82 = vmatpush1.msra.mxu0 0.0
    %83 = vmatprep.subr.mxu0 0.0
    %84 = vmatpush1.msra.mxu0 0.0
    %85 = vmatprep.subr.mxu0 0.0
    %86 = vmatpush1.msra.mxu0 0.0
    %87 = vmatprep.subr.mxu0 0.0
    %88 = vmatpush1.msra.mxu0 0.0
    %89 = vmatprep.subr.mxu0 0.0
    %90 = vmatpush1.msra.mxu0 0.0
    %91 = vmatprep.subr.mxu0 0.0
    %92 = vmatpush1.msra.mxu0 0.0
    %93 = vmatprep.subr.mxu0 0.0
    %94 = vmatpush1.msra.mxu0 0.0
    %95 = vmatprep.subr.mxu0 0.0
    %96 = vmatpush1.msra.mxu0 0.0
    %97 = vmatprep.subr.mxu0 0.0
    %98 = vmatpush1.msra.mxu0 0.0
    %99 = vmatprep.subr.mxu0 0.0
    %100 = vmatpush1.msra.mxu0 0.0
    %101 = vmatprep.subr.mxu0 0.0
    %102 = vmatpush1.msra.mxu0 0.0
    %103 = vmatprep.subr.mxu0 0.0
    %104 = vmatpush1.msra.mxu0 0.0
    %105 = vmatprep.subr.mxu0 0.0
    %106 = vmatpush1.msra.mxu0 0.0
    %107 = vmatprep.subr.mxu0 0.0
    %108 = vmatpush1.msra.mxu0 0.0
    %109 = vmatprep.subr.mxu0 0.0
    %110 = vmatpush1.msra.mxu0 0.0
    %111 = vmatprep.subr.mxu0 0.0
    %112 = vmatpush1.msra.mxu0 0.0
    %113 = vmatprep.subr.mxu0 0.0
    %114 = vmatpush1.msra.mxu0 0.0
    %115 = vmatprep.subr.mxu0 0.0
    %116 = vmatpush1.msra.mxu0 0.0
    %117 = vmatprep.subr.mxu0 0.0
    %118 = vmatpush1.msra.mxu0 0.0
    %119 = vmatprep.subr.mxu0 0.0
    %120 = vmatpush1.msra.mxu0 0.0
    %121 = vmatprep.subr.mxu0 0.0
    %122 = vmatpush1.msra.mxu0 0.0
    %123 = vmatprep.subr.mxu0 0.0
    %124 = vmatpush1.msra.mxu0 0.0
    %125 = vmatprep.subr.mxu0 0.0
    %126 = vmatpush1.msra.mxu0 0.0
    %127 = vmatprep.mubr.f32.mxu0 0.0
    %128 = vmatmul.mubr.f32.gmra.mrb[0].mxu0 %v58
    %v129 = vpop.f32.mrb[0].mxu0
    %v130 = vadd.f32 %v54, %v129
    %v131 = vpop.f32.mrb[0].mxu0
    %132 = vmatprep.mubr.f32.mxu0 0.0
    %133 = vmatmul.mubr.f32.gmra.mrb[0].mxu0 %v61
    %v134 = vpop.f32.mrb[0].mxu0
    %v135 = vadd.f32 %v54, %v134
    %v136 = vpop.f32.mrb[0].mxu0
    %137 = vdwg.mxu0
    %138 = vst [vmem:[#allocation7] sm:$0xff] %v130
    %139 = vst [vmem:[#allocation7 + $0x8] sm:$0xff] %v135
    // Predicated region
    $region22: #{tpu_custom_call.1} parent=1 // pred_check
      _
    $region23: #{tpu_custom_call.1} parent=1 // pred_check_branch
      %141 = sbr.rel (0) target = $region25
    $region24: #{tpu_custom_call.1} parent=1 // pred_region
      %s143 = ssub.s32 256, 256
      %144 = vsyncadd [#allocation4], %s143
      %s145 = sshll.u32 [#allocation7], 4
      %s146 = int_to_ptr.vmem [resolvable:$true] %s145
      %151 = dma.vmem_to_hbm [thread:$0]  %s146, 256, %s3, [#allocation4], 128, 128, 8
    $region25: #{tpu_custom_call.1} parent=1 // pred_fallthru
      _
    // Predicated region
    $region26: #{tpu_custom_call.1} parent=1 // pred_check
      _
    $region27: #{tpu_custom_call.1} parent=1 // pred_check_branch
      %153 = sbr.rel (0) target = $region29
    $region28: #{tpu_custom_call.1} parent=1 // pred_region
      %154 = dma.done [#allocation4], 256
    $region29: #{tpu_custom_call.1} parent=1 // pred_fallthru
      _
    %155 = vsyncpa [#allocation3], 1
    %156 = vsyncpa [#allocation6], 1
    %157 = vsyncpa [#allocation4], 1

</llo_original>
